<compile_context>
chip_gen: v7x
topology: tpu7x:2x2x1
jax: 0.10.0
libtpu: 0.0.40
codegen_flags: <defaults>
</compile_context>

<pallas_src>
import functools

import jax
import jax.numpy as jnp
from jax.experimental import pallas as pl
from jax.experimental.pallas import tpu as pltpu

NEG_SLOPE = 0.01   # torch.nn.LeakyReLU default
N_STACK = 9        # enc1..enc3, enc_lat, dec0..dec3, dec_out
LAT_IDX = 3        # stack index whose output is the latent (no activation)


def _leaky_relu(x):
    return jnp.where(x > 0, x, NEG_SLOPE * x)


def _round_up(n, m):
    return ((n + m - 1) // m) * m


def mlp_ae_kernel(x_ref, w_in_ref, b_in_ref, w_stack_ref, b_stack_ref, out_ref,
                  *, mm_dtype):
    # First encoder layer: (bt, F_in) @ (F_in, H). Matmul-dtype operands
    # (pre-cast in the wrapper), f32 accumulation; bias-add / LeakyReLU in f32.
    h = jnp.dot(x_ref[...], w_in_ref[...],
                preferred_element_type=jnp.float32) + b_in_ref[...]
    h = _leaky_relu(h)

    # Nine stacked (H, H) layers, statically unrolled. Layer LAT_IDX is the
    # latent projection (no activation; its nonzero lanes sit at
    # [input_size, input_size+lat_size) by construction in _pack_params); the
    # last layer is the reconstruction (no activation; nonzero lanes
    # [0, input_size)). Their nonzero lanes are disjoint, so a single VPU add
    # packs both into one unmasked lane-dense (tile, H) store.
    lat = None
    for i in range(N_STACK):
        h = (jnp.dot(h.astype(mm_dtype), w_stack_ref[i],
                     preferred_element_type=jnp.float32) + b_stack_ref[i])
        if i == LAT_IDX:
            lat = h                       # keep latent live in f32 for decoder
        elif i == N_STACK - 1:
            out_ref[...] = (h + lat).astype(out_ref.dtype)
        else:
            h = _leaky_relu(h)


def make_params(key, input_size, lat_size, hidden_size=128, dtype=jnp.float32):
    """Deterministic parameter init (shapes match the PyTorch module).

    Weights are stored as (in_features, out_features); biases as (1, out)."""
    enc_dims = [input_size] + [hidden_size] * 4 + [lat_size]
    dec_dims = [lat_size] + [hidden_size] * 4 + [input_size]

    def init_stack(key, dims):
        ws, bs = [], []
        for i in range(len(dims) - 1):
            key, kw, kb = jax.random.split(key, 3)
            bound = 1.0 / jnp.sqrt(dims[i])
            ws.append(jax.random.uniform(kw, (dims[i], dims[i + 1]), dtype, -bound, bound))
            bs.append(jax.random.uniform(kb, (1, dims[i + 1]), dtype, -bound, bound))
        return key, ws, bs

    key, enc_w, enc_b = init_stack(key, enc_dims)
    key, dec_w, dec_b = init_stack(key, dec_dims)
    return enc_w, enc_b, dec_w, dec_b


def _pack_params(enc_w, enc_b, dec_w, dec_b, mm_dtype):
    """Pad the narrow latent/reconstruction layers to H lanes, place the latent
    columns at lanes [input_size, input_size+lat_size) (so rec+lat pack into
    one 128-lane output), and stack the nine (H, H) layers.

    Zero-padding is exact: padded latent lanes are zero-weight + zero-bias with
    no activation, and the matching rows of the first decoder weight are zero,
    so they contribute nothing to the decoder."""
    H = enc_w[0].shape[1]
    input_size = dec_w[4].shape[1]
    lat_size = enc_w[4].shape[1]
    assert H % 128 == 0, "hidden_size must be a multiple of 128 lanes"
    assert input_size + lat_size <= H, (
        "packed single-output layout needs input_size + lat_size <= hidden_size")

    # Latent projection shifted to lanes [input_size, input_size+lat_size).
    w_lat = jnp.pad(enc_w[4], ((0, 0), (input_size, H - input_size - lat_size)))
    b_lat = jnp.pad(enc_b[4], ((0, 0), (input_size, H - input_size - lat_size)))
    # First decoder layer consumes the shifted latent (zero rows elsewhere).
    w_dec0 = jnp.pad(dec_w[0], ((input_size, H - input_size - lat_size), (0, 0)))
    # Reconstruction occupies lanes [0, input_size).
    w_rec = jnp.pad(dec_w[4], ((0, 0), (0, H - input_size)))
    b_rec = jnp.pad(dec_b[4], ((0, 0), (0, H - input_size)))

    w_in = enc_w[0].astype(mm_dtype)                 # (F_in, H)
    b_in = enc_b[0].astype(jnp.float32)              # (1, H)
    w_stack = jnp.stack(
        [enc_w[1], enc_w[2], enc_w[3], w_lat,
         w_dec0, dec_w[1], dec_w[2], dec_w[3], w_rec]).astype(mm_dtype)       # (9, H, H)
    b_stack = jnp.stack(
        [enc_b[1], enc_b[2], enc_b[3], b_lat,
         dec_b[0], dec_b[1], dec_b[2], dec_b[3], b_rec]).astype(jnp.float32)  # (9, 1, H)
    return w_in, b_in, w_stack, b_stack


def _select_batch_tile(B):
    # >=16 rows always; >=2 grid steps once B >= 64 (dual-TC v7x sharding via
    # dimension_semantics=("parallel",)); 512-row tiles (multiple of 256) for
    # very large batches to amortize per-grid-step overhead.
    if B < 64:
        return _round_up(B, 16)
    if B <= 1024:
        return _round_up(pl.cdiv(B, 2), 16)
    return 512


@functools.partial(jax.jit, static_argnames=("batch_tile", "use_bf16"))
def mlp_autoencoder_forward(x, enc_w, enc_b, dec_w, dec_b, *,
                            batch_tile=None, use_bf16=True):
    B, input_size = x.shape
    lat_size = enc_w[4].shape[1]
    H = enc_w[0].shape[1]

    mm_dtype = jnp.bfloat16 if use_bf16 else jnp.float32
    w_in, b_in, w_stack, b_stack = _pack_params(enc_w, enc_b, dec_w, dec_b, mm_dtype)

    # Pre-cast activations to the matmul dtype (halves x DMA when bf16).
    x = x.astype(mm_dtype)

    if batch_tile is None:
        batch_tile = _select_batch_tile(B)
    B_pad = pl.cdiv(B, batch_tile) * batch_tile
    if B_pad != B:
        x = jnp.pad(x, ((0, B_pad - B), (0, 0)))
    grid = (B_pad // batch_tile,)

    def const_spec(arr):
        # grid-invariant parameter: whole array resident in VMEM each step
        return pl.BlockSpec(arr.shape, lambda i, _n=arr.ndim: (0,) * _n)

    out = pl.pallas_call(
        functools.partial(mlp_ae_kernel, mm_dtype=mm_dtype),
        out_shape=jax.ShapeDtypeStruct((B_pad, H), jnp.float32),
        grid_spec=pltpu.PrefetchScalarGridSpec(
            num_scalar_prefetch=0,
            grid=grid,
            in_specs=[
                pl.BlockSpec((batch_tile, input_size), lambda i: (i, 0)),
                const_spec(w_in), const_spec(b_in),
                const_spec(w_stack), const_spec(b_stack),
            ],
            out_specs=pl.BlockSpec((batch_tile, H), lambda i: (i, 0)),
        ),
        compiler_params=pltpu.CompilerParams(
            dimension_semantics=("parallel",),
        ),
    )(x, w_in, b_in, w_stack, b_stack)

    # Unpack: reconstruction at lanes [0, F_in), latent at [F_in, F_in+L).
    rec = out[:B, :input_size]
    lat = out[:B, input_size:input_size + lat_size]
    return rec, lat


def reference_forward(x, enc_w, enc_b, dec_w, dec_b, mimic_bf16=False):
    def lin(h, w, b):
        if mimic_bf16:
            h = h.astype(jnp.bfloat16)
            w = w.astype(jnp.bfloat16)
        return jnp.dot(h, w, preferred_element_type=jnp.float32) + b
    h = x
    for i in range(4):
        h = jax.nn.leaky_relu(lin(h, enc_w[i], enc_b[i]), NEG_SLOPE)
    lat = lin(h, enc_w[4], enc_b[4])
    h = lat
    for i in range(4):
        h = jax.nn.leaky_relu(lin(h, dec_w[i], dec_b[i]), NEG_SLOPE)
    rec = lin(h, dec_w[4], dec_b[4])
    return rec, lat


if __name__ == "__main__":
    INPUT_SIZE = 32
    LAT_SIZE = 16
    HIDDEN_SIZE = 128
    BATCH = 16

    key = jax.random.PRNGKey(0)
    key, kx = jax.random.split(key)
    x = jax.random.normal(kx, (BATCH, INPUT_SIZE), jnp.float32)

    enc_w, enc_b, dec_w, dec_b = make_params(key, INPUT_SIZE, LAT_SIZE, HIDDEN_SIZE)

    # Default (bf16 MXU operands, f32 accumulation / epilogue).
    rec, lat = mlp_autoencoder_forward(x, enc_w, enc_b, dec_w, dec_b)
    jax.block_until_ready((rec, lat))
    assert rec.shape == (BATCH, INPUT_SIZE) and lat.shape == (BATCH, LAT_SIZE)
    assert rec.dtype == jnp.float32 and lat.dtype == jnp.float32

    # Tight check against a reference that mimics the kernel's bf16 matmul
    # operands (f32 accumulation) ...
    rec_bf, lat_bf = reference_forward(x, enc_w, enc_b, dec_w, dec_b, mimic_bf16=True)
    assert jnp.allclose(rec, rec_bf, atol=5e-3, rtol=5e-3)
    assert jnp.allclose(lat, lat_bf, atol=5e-3, rtol=5e-3)

    # ... plus a loose sanity check against pure-f32 math.
    rec_f32, lat_f32 = reference_forward(x, enc_w, enc_b, dec_w, dec_b, mimic_bf16=False)
    assert jnp.allclose(rec, rec_f32, atol=5e-2, rtol=5e-2)
    assert jnp.allclose(lat, lat_f32, atol=5e-2, rtol=5e-2)

    # Full-precision switch (torch-parity operands) also runs and tracks f32 math.
    rec_x, lat_x = mlp_autoencoder_forward(x, enc_w, enc_b, dec_w, dec_b, use_bf16=False)
    jax.block_until_ready((rec_x, lat_x))
    assert jnp.allclose(rec_x, rec_f32, atol=1e-2, rtol=1e-2)
    assert jnp.allclose(lat_x, lat_f32, atol=1e-2, rtol=1e-2)

    print("KERNEL_OK")
</pallas_src>

<mosaic_0001>
module attributes {stable_mosaic.version = 11 : i64} {
  func.func @mlp_ae_kernel(%arg0: i32, %arg1: memref<16x32xbf16, #tpu.memory_space<vmem>>, %arg2: memref<32x128xbf16, #tpu.memory_space<vmem>>, %arg3: memref<1x128xf32, #tpu.memory_space<vmem>>, %arg4: memref<9x128x128xbf16, #tpu.memory_space<vmem>>, %arg5: memref<9x1x128xf32, #tpu.memory_space<vmem>>, %arg6: memref<16x128xf32, #tpu.memory_space<vmem>>) attributes {dimension_semantics = [#tpu.dimension_semantics<parallel>], iteration_bounds = array<i64: 1>, scalar_prefetch = 0 : i64, scratch_operands = 0 : i64, tpu.core_type = #tpu.core_type<tc>, window_params = [{transform_indices = @transform_0, window_bounds = array<i64: 16, 32>}, {pipeline_mode = #tpu.pipeline_mode<synchronous>, transform_indices = @transform_1, window_bounds = array<i64: 32, 128>}, {pipeline_mode = #tpu.pipeline_mode<synchronous>, transform_indices = @transform_2, window_bounds = array<i64: 1, 128>}, {pipeline_mode = #tpu.pipeline_mode<synchronous>, transform_indices = @transform_3, window_bounds = array<i64: 9, 128, 128>}, {pipeline_mode = #tpu.pipeline_mode<synchronous>, transform_indices = @transform_4, window_bounds = array<i64: 9, 1, 128>}, {transform_indices = @transform_5, window_bounds = array<i64: 16, 128>}]} {
    %c0 = arith.constant 0 : index
    %c0_0 = arith.constant 0 : index
    %0 = vector.load %arg1[%c0, %c0_0] : memref<16x32xbf16, #tpu.memory_space<vmem>>, vector<16x32xbf16>
    %c0_1 = arith.constant 0 : index
    %c0_2 = arith.constant 0 : index
    %1 = vector.load %arg2[%c0_1, %c0_2] : memref<32x128xbf16, #tpu.memory_space<vmem>>, vector<32x128xbf16>
    %cst = arith.constant dense<0.000000e+00> : vector<16x128xf32>
    %2 = tpu.matmul %0, %1, %cst {dimension_numbers = #tpu.dot_dimension_numbers<[1], [0], [0], [1], [0, 0, 1, 1], [], []>} : vector<16x32xbf16>, vector<32x128xbf16>, vector<16x128xf32> -> vector<16x128xf32>
    %c0_3 = arith.constant 0 : index
    %c0_4 = arith.constant 0 : index
    %3 = vector.load %arg3[%c0_3, %c0_4] : memref<1x128xf32, #tpu.memory_space<vmem>>, vector<1x128xf32>
    %4 = vector.broadcast %3 : vector<1x128xf32> to vector<16x128xf32>
    %5 = arith.addf %2, %4 : vector<16x128xf32>
    %cst_5 = arith.constant 0.000000e+00 : f32
    %6 = vector.broadcast %cst_5 : f32 to vector<16x128xf32>
    %7 = arith.cmpf ogt, %5, %6 : vector<16x128xf32>
    %cst_6 = arith.constant 0.00999999977 : f32
    %8 = vector.broadcast %cst_6 : f32 to vector<16x128xf32>
    %9 = arith.mulf %8, %5 : vector<16x128xf32>
    %10 = arith.select %7, %5, %9 : vector<16x128xi1>, vector<16x128xf32>
    %11 = arith.truncf %10 : vector<16x128xf32> to vector<16x128xbf16>
    %c0_7 = arith.constant 0 : index
    %c0_8 = arith.constant 0 : index
    %c0_9 = arith.constant 0 : index
    %12 = vector.load %arg4[%c0_7, %c0_8, %c0_9] : memref<9x128x128xbf16, #tpu.memory_space<vmem>>, vector<1x128x128xbf16>
    %13 = vector.shape_cast %12 : vector<1x128x128xbf16> to vector<128x128xbf16>
    %cst_10 = arith.constant dense<0.000000e+00> : vector<16x128xf32>
    %14 = tpu.matmul %11, %13, %cst_10 {dimension_numbers = #tpu.dot_dimension_numbers<[1], [0], [0], [1], [0, 0, 1, 1], [], []>} : vector<16x128xbf16>, vector<128x128xbf16>, vector<16x128xf32> -> vector<16x128xf32>
    %c0_11 = arith.constant 0 : index
    %c0_12 = arith.constant 0 : index
    %c0_13 = arith.constant 0 : index
    %15 = vector.load %arg5[%c0_11, %c0_12, %c0_13] : memref<9x1x128xf32, #tpu.memory_space<vmem>>, vector<1x1x128xf32>
    %16 = vector.shape_cast %15 : vector<1x1x128xf32> to vector<1x128xf32>
    %17 = vector.broadcast %16 : vector<1x128xf32> to vector<16x128xf32>
    %18 = arith.addf %14, %17 : vector<16x128xf32>
    %cst_14 = arith.constant 0.000000e+00 : f32
    %19 = vector.broadcast %cst_14 : f32 to vector<16x128xf32>
    %20 = arith.cmpf ogt, %18, %19 : vector<16x128xf32>
    %cst_15 = arith.constant 0.00999999977 : f32
    %21 = vector.broadcast %cst_15 : f32 to vector<16x128xf32>
    %22 = arith.mulf %21, %18 : vector<16x128xf32>
    %23 = arith.select %20, %18, %22 : vector<16x128xi1>, vector<16x128xf32>
    %24 = arith.truncf %23 : vector<16x128xf32> to vector<16x128xbf16>
    %c1 = arith.constant 1 : index
    %c0_16 = arith.constant 0 : index
    %c0_17 = arith.constant 0 : index
    %25 = vector.load %arg4[%c1, %c0_16, %c0_17] : memref<9x128x128xbf16, #tpu.memory_space<vmem>>, vector<1x128x128xbf16>
    %26 = vector.shape_cast %25 : vector<1x128x128xbf16> to vector<128x128xbf16>
    %cst_18 = arith.constant dense<0.000000e+00> : vector<16x128xf32>
    %27 = tpu.matmul %24, %26, %cst_18 {dimension_numbers = #tpu.dot_dimension_numbers<[1], [0], [0], [1], [0, 0, 1, 1], [], []>} : vector<16x128xbf16>, vector<128x128xbf16>, vector<16x128xf32> -> vector<16x128xf32>
    %c1_19 = arith.constant 1 : index
    %c0_20 = arith.constant 0 : index
    %c0_21 = arith.constant 0 : index
    %28 = vector.load %arg5[%c1_19, %c0_20, %c0_21] : memref<9x1x128xf32, #tpu.memory_space<vmem>>, vector<1x1x128xf32>
    %29 = vector.shape_cast %28 : vector<1x1x128xf32> to vector<1x128xf32>
    %30 = vector.broadcast %29 : vector<1x128xf32> to vector<16x128xf32>
    %31 = arith.addf %27, %30 : vector<16x128xf32>
    %cst_22 = arith.constant 0.000000e+00 : f32
    %32 = vector.broadcast %cst_22 : f32 to vector<16x128xf32>
    %33 = arith.cmpf ogt, %31, %32 : vector<16x128xf32>
    %cst_23 = arith.constant 0.00999999977 : f32
    %34 = vector.broadcast %cst_23 : f32 to vector<16x128xf32>
    %35 = arith.mulf %34, %31 : vector<16x128xf32>
    %36 = arith.select %33, %31, %35 : vector<16x128xi1>, vector<16x128xf32>
    %37 = arith.truncf %36 : vector<16x128xf32> to vector<16x128xbf16>
    %c2 = arith.constant 2 : index
    %c0_24 = arith.constant 0 : index
    %c0_25 = arith.constant 0 : index
    %38 = vector.load %arg4[%c2, %c0_24, %c0_25] : memref<9x128x128xbf16, #tpu.memory_space<vmem>>, vector<1x128x128xbf16>
    %39 = vector.shape_cast %38 : vector<1x128x128xbf16> to vector<128x128xbf16>
    %cst_26 = arith.constant dense<0.000000e+00> : vector<16x128xf32>
    %40 = tpu.matmul %37, %39, %cst_26 {dimension_numbers = #tpu.dot_dimension_numbers<[1], [0], [0], [1], [0, 0, 1, 1], [], []>} : vector<16x128xbf16>, vector<128x128xbf16>, vector<16x128xf32> -> vector<16x128xf32>
    %c2_27 = arith.constant 2 : index
    %c0_28 = arith.constant 0 : index
    %c0_29 = arith.constant 0 : index
    %41 = vector.load %arg5[%c2_27, %c0_28, %c0_29] : memref<9x1x128xf32, #tpu.memory_space<vmem>>, vector<1x1x128xf32>
    %42 = vector.shape_cast %41 : vector<1x1x128xf32> to vector<1x128xf32>
    %43 = vector.broadcast %42 : vector<1x128xf32> to vector<16x128xf32>
    %44 = arith.addf %40, %43 : vector<16x128xf32>
    %cst_30 = arith.constant 0.000000e+00 : f32
    %45 = vector.broadcast %cst_30 : f32 to vector<16x128xf32>
    %46 = arith.cmpf ogt, %44, %45 : vector<16x128xf32>
    %cst_31 = arith.constant 0.00999999977 : f32
    %47 = vector.broadcast %cst_31 : f32 to vector<16x128xf32>
    %48 = arith.mulf %47, %44 : vector<16x128xf32>
    %49 = arith.select %46, %44, %48 : vector<16x128xi1>, vector<16x128xf32>
    %50 = arith.truncf %49 : vector<16x128xf32> to vector<16x128xbf16>
    %c3 = arith.constant 3 : index
    %c0_32 = arith.constant 0 : index
    %c0_33 = arith.constant 0 : index
    %51 = vector.load %arg4[%c3, %c0_32, %c0_33] : memref<9x128x128xbf16, #tpu.memory_space<vmem>>, vector<1x128x128xbf16>
    %52 = vector.shape_cast %51 : vector<1x128x128xbf16> to vector<128x128xbf16>
    %cst_34 = arith.constant dense<0.000000e+00> : vector<16x128xf32>
    %53 = tpu.matmul %50, %52, %cst_34 {dimension_numbers = #tpu.dot_dimension_numbers<[1], [0], [0], [1], [0, 0, 1, 1], [], []>} : vector<16x128xbf16>, vector<128x128xbf16>, vector<16x128xf32> -> vector<16x128xf32>
    %c3_35 = arith.constant 3 : index
    %c0_36 = arith.constant 0 : index
    %c0_37 = arith.constant 0 : index
    %54 = vector.load %arg5[%c3_35, %c0_36, %c0_37] : memref<9x1x128xf32, #tpu.memory_space<vmem>>, vector<1x1x128xf32>
    %55 = vector.shape_cast %54 : vector<1x1x128xf32> to vector<1x128xf32>
    %56 = vector.broadcast %55 : vector<1x128xf32> to vector<16x128xf32>
    %57 = arith.addf %53, %56 : vector<16x128xf32>
    %58 = arith.truncf %57 : vector<16x128xf32> to vector<16x128xbf16>
    %c4 = arith.constant 4 : index
    %c0_38 = arith.constant 0 : index
    %c0_39 = arith.constant 0 : index
    %59 = vector.load %arg4[%c4, %c0_38, %c0_39] : memref<9x128x128xbf16, #tpu.memory_space<vmem>>, vector<1x128x128xbf16>
    %60 = vector.shape_cast %59 : vector<1x128x128xbf16> to vector<128x128xbf16>
    %cst_40 = arith.constant dense<0.000000e+00> : vector<16x128xf32>
    %61 = tpu.matmul %58, %60, %cst_40 {dimension_numbers = #tpu.dot_dimension_numbers<[1], [0], [0], [1], [0, 0, 1, 1], [], []>} : vector<16x128xbf16>, vector<128x128xbf16>, vector<16x128xf32> -> vector<16x128xf32>
    %c4_41 = arith.constant 4 : index
    %c0_42 = arith.constant 0 : index
    %c0_43 = arith.constant 0 : index
    %62 = vector.load %arg5[%c4_41, %c0_42, %c0_43] : memref<9x1x128xf32, #tpu.memory_space<vmem>>, vector<1x1x128xf32>
    %63 = vector.shape_cast %62 : vector<1x1x128xf32> to vector<1x128xf32>
    %64 = vector.broadcast %63 : vector<1x128xf32> to vector<16x128xf32>
    %65 = arith.addf %61, %64 : vector<16x128xf32>
    %cst_44 = arith.constant 0.000000e+00 : f32
    %66 = vector.broadcast %cst_44 : f32 to vector<16x128xf32>
    %67 = arith.cmpf ogt, %65, %66 : vector<16x128xf32>
    %cst_45 = arith.constant 0.00999999977 : f32
    %68 = vector.broadcast %cst_45 : f32 to vector<16x128xf32>
    %69 = arith.mulf %68, %65 : vector<16x128xf32>
    %70 = arith.select %67, %65, %69 : vector<16x128xi1>, vector<16x128xf32>
    %71 = arith.truncf %70 : vector<16x128xf32> to vector<16x128xbf16>
    %c5 = arith.constant 5 : index
    %c0_46 = arith.constant 0 : index
    %c0_47 = arith.constant 0 : index
    %72 = vector.load %arg4[%c5, %c0_46, %c0_47] : memref<9x128x128xbf16, #tpu.memory_space<vmem>>, vector<1x128x128xbf16>
    %73 = vector.shape_cast %72 : vector<1x128x128xbf16> to vector<128x128xbf16>
    %cst_48 = arith.constant dense<0.000000e+00> : vector<16x128xf32>
    %74 = tpu.matmul %71, %73, %cst_48 {dimension_numbers = #tpu.dot_dimension_numbers<[1], [0], [0], [1], [0, 0, 1, 1], [], []>} : vector<16x128xbf16>, vector<128x128xbf16>, vector<16x128xf32> -> vector<16x128xf32>
    %c5_49 = arith.constant 5 : index
    %c0_50 = arith.constant 0 : index
    %c0_51 = arith.constant 0 : index
    %75 = vector.load %arg5[%c5_49, %c0_50, %c0_51] : memref<9x1x128xf32, #tpu.memory_space<vmem>>, vector<1x1x128xf32>
    %76 = vector.shape_cast %75 : vector<1x1x128xf32> to vector<1x128xf32>
    %77 = vector.broadcast %76 : vector<1x128xf32> to vector<16x128xf32>
    %78 = arith.addf %74, %77 : vector<16x128xf32>
    %cst_52 = arith.constant 0.000000e+00 : f32
    %79 = vector.broadcast %cst_52 : f32 to vector<16x128xf32>
    %80 = arith.cmpf ogt, %78, %79 : vector<16x128xf32>
    %cst_53 = arith.constant 0.00999999977 : f32
    %81 = vector.broadcast %cst_53 : f32 to vector<16x128xf32>
    %82 = arith.mulf %81, %78 : vector<16x128xf32>
    %83 = arith.select %80, %78, %82 : vector<16x128xi1>, vector<16x128xf32>
    %84 = arith.truncf %83 : vector<16x128xf32> to vector<16x128xbf16>
    %c6 = arith.constant 6 : index
    %c0_54 = arith.constant 0 : index
    %c0_55 = arith.constant 0 : index
    %85 = vector.load %arg4[%c6, %c0_54, %c0_55] : memref<9x128x128xbf16, #tpu.memory_space<vmem>>, vector<1x128x128xbf16>
    %86 = vector.shape_cast %85 : vector<1x128x128xbf16> to vector<128x128xbf16>
    %cst_56 = arith.constant dense<0.000000e+00> : vector<16x128xf32>
    %87 = tpu.matmul %84, %86, %cst_56 {dimension_numbers = #tpu.dot_dimension_numbers<[1], [0], [0], [1], [0, 0, 1, 1], [], []>} : vector<16x128xbf16>, vector<128x128xbf16>, vector<16x128xf32> -> vector<16x128xf32>
    %c6_57 = arith.constant 6 : index
    %c0_58 = arith.constant 0 : index
    %c0_59 = arith.constant 0 : index
    %88 = vector.load %arg5[%c6_57, %c0_58, %c0_59] : memref<9x1x128xf32, #tpu.memory_space<vmem>>, vector<1x1x128xf32>
    %89 = vector.shape_cast %88 : vector<1x1x128xf32> to vector<1x128xf32>
    %90 = vector.broadcast %89 : vector<1x128xf32> to vector<16x128xf32>
    %91 = arith.addf %87, %90 : vector<16x128xf32>
    %cst_60 = arith.constant 0.000000e+00 : f32
    %92 = vector.broadcast %cst_60 : f32 to vector<16x128xf32>
    %93 = arith.cmpf ogt, %91, %92 : vector<16x128xf32>
    %cst_61 = arith.constant 0.00999999977 : f32
    %94 = vector.broadcast %cst_61 : f32 to vector<16x128xf32>
    %95 = arith.mulf %94, %91 : vector<16x128xf32>
    %96 = arith.select %93, %91, %95 : vector<16x128xi1>, vector<16x128xf32>
    %97 = arith.truncf %96 : vector<16x128xf32> to vector<16x128xbf16>
    %c7 = arith.constant 7 : index
    %c0_62 = arith.constant 0 : index
    %c0_63 = arith.constant 0 : index
    %98 = vector.load %arg4[%c7, %c0_62, %c0_63] : memref<9x128x128xbf16, #tpu.memory_space<vmem>>, vector<1x128x128xbf16>
    %99 = vector.shape_cast %98 : vector<1x128x128xbf16> to vector<128x128xbf16>
    %cst_64 = arith.constant dense<0.000000e+00> : vector<16x128xf32>
    %100 = tpu.matmul %97, %99, %cst_64 {dimension_numbers = #tpu.dot_dimension_numbers<[1], [0], [0], [1], [0, 0, 1, 1], [], []>} : vector<16x128xbf16>, vector<128x128xbf16>, vector<16x128xf32> -> vector<16x128xf32>
    %c7_65 = arith.constant 7 : index
    %c0_66 = arith.constant 0 : index
    %c0_67 = arith.constant 0 : index
    %101 = vector.load %arg5[%c7_65, %c0_66, %c0_67] : memref<9x1x128xf32, #tpu.memory_space<vmem>>, vector<1x1x128xf32>
    %102 = vector.shape_cast %101 : vector<1x1x128xf32> to vector<1x128xf32>
    %103 = vector.broadcast %102 : vector<1x128xf32> to vector<16x128xf32>
    %104 = arith.addf %100, %103 : vector<16x128xf32>
    %cst_68 = arith.constant 0.000000e+00 : f32
    %105 = vector.broadcast %cst_68 : f32 to vector<16x128xf32>
    %106 = arith.cmpf ogt, %104, %105 : vector<16x128xf32>
    %cst_69 = arith.constant 0.00999999977 : f32
    %107 = vector.broadcast %cst_69 : f32 to vector<16x128xf32>
    %108 = arith.mulf %107, %104 : vector<16x128xf32>
    %109 = arith.select %106, %104, %108 : vector<16x128xi1>, vector<16x128xf32>
    %110 = arith.truncf %109 : vector<16x128xf32> to vector<16x128xbf16>
    %c8 = arith.constant 8 : index
    %c0_70 = arith.constant 0 : index
    %c0_71 = arith.constant 0 : index
    %111 = vector.load %arg4[%c8, %c0_70, %c0_71] : memref<9x128x128xbf16, #tpu.memory_space<vmem>>, vector<1x128x128xbf16>
    %112 = vector.shape_cast %111 : vector<1x128x128xbf16> to vector<128x128xbf16>
    %cst_72 = arith.constant dense<0.000000e+00> : vector<16x128xf32>
    %113 = tpu.matmul %110, %112, %cst_72 {dimension_numbers = #tpu.dot_dimension_numbers<[1], [0], [0], [1], [0, 0, 1, 1], [], []>} : vector<16x128xbf16>, vector<128x128xbf16>, vector<16x128xf32> -> vector<16x128xf32>
    %c8_73 = arith.constant 8 : index
    %c0_74 = arith.constant 0 : index
    %c0_75 = arith.constant 0 : index
    %114 = vector.load %arg5[%c8_73, %c0_74, %c0_75] : memref<9x1x128xf32, #tpu.memory_space<vmem>>, vector<1x1x128xf32>
    %115 = vector.shape_cast %114 : vector<1x1x128xf32> to vector<1x128xf32>
    %116 = vector.broadcast %115 : vector<1x128xf32> to vector<16x128xf32>
    %117 = arith.addf %113, %116 : vector<16x128xf32>
    %118 = arith.addf %117, %57 : vector<16x128xf32>
    %c0_76 = arith.constant 0 : index
    %c0_77 = arith.constant 0 : index
    %119 = vector.load %arg6[%c0_76, %c0_77] : memref<16x128xf32, #tpu.memory_space<vmem>>, vector<16x128xf32>
    tpu.vector_store %arg6[%c0_76, %c0_77], %118 {strides = array<i32>} : memref<16x128xf32, #tpu.memory_space<vmem>>, vector<16x128xf32>,
    return
  }
  func.func @transform_0(%arg0: i32) -> (i32, i32) {
    %c0_i32 = arith.constant 0 : i32
    %c0_i32_0 = arith.constant 0 : i32
    return %arg0, %c0_i32 : i32, i32
  }
  func.func @transform_1(%arg0: i32) -> (i32, i32) {
    %c0_i32 = arith.constant 0 : i32
    %c0_i32_0 = arith.constant 0 : i32
    %c0_i32_1 = arith.constant 0 : i32
    return %c0_i32, %c0_i32_0 : i32, i32
  }
  func.func @transform_2(%arg0: i32) -> (i32, i32) {
    %c0_i32 = arith.constant 0 : i32
    %c0_i32_0 = arith.constant 0 : i32
    %c0_i32_1 = arith.constant 0 : i32
    return %c0_i32, %c0_i32_0 : i32, i32
  }
  func.func @transform_3(%arg0: i32) -> (i32, i32, i32) {
    %c0_i32 = arith.constant 0 : i32
    %c0_i32_0 = arith.constant 0 : i32
    %c0_i32_1 = arith.constant 0 : i32
    %c0_i32_2 = arith.constant 0 : i32
    return %c0_i32, %c0_i32_0, %c0_i32_1 : i32, i32, i32
  }
  func.func @transform_4(%arg0: i32) -> (i32, i32, i32) {
    %c0_i32 = arith.constant 0 : i32
    %c0_i32_0 = arith.constant 0 : i32
    %c0_i32_1 = arith.constant 0 : i32
    %c0_i32_2 = arith.constant 0 : i32
    return %c0_i32, %c0_i32_0, %c0_i32_1 : i32, i32, i32
  }
  func.func @transform_5(%arg0: i32) -> (i32, i32) {
    %c0_i32 = arith.constant 0 : i32
    %c0_i32_0 = arith.constant 0 : i32
    return %arg0, %c0_i32 : i32, i32
  }
}

</mosaic_0001>

<llo_original>
// kernel: mlp_autoencoder_forward.1
$region0: #{mlp_autoencoder_forward.1}
  #allocation0 [shape = 'u32[]', space=smem, size = 0x4, offset = 0x4, fixed_abs, tag = 'smem constant byte address 0x4 - core index']
  #allocation1 [shape = 'u32[144,128]{1,0:T(1,128)}', space=vmem, size = 0x12000, scoped, tag = 'internal scratch']
  %s0 = inlined_call_operand.vmem [shape: bf16[16,32], index: 0, kind: input, shape index: {}]
  %s1 = inlined_call_operand.vmem [shape: bf16[32,128], index: 1, kind: input, shape index: {}]
  %s2 = inlined_call_operand.vmem [shape: f32[1,128], index: 2, kind: input, shape index: {}]
  %s3 = inlined_call_operand.vmem [shape: bf16[9,128,128], index: 3, kind: input, shape index: {}]
  %s4 = inlined_call_operand.vmem [shape: f32[9,1,128], index: 4, kind: input, shape index: {}]
  %s5 = inlined_call_operand.vmem [shape: f32[16,128], index: 5, kind: output, shape index: {}]
  %s6 = sld [smem:[#allocation0]]
  $region30: #{mlp_autoencoder_forward.1} parent=0
    _
  %s8 = ssub.s32 1, %s6
  %s9 = scalar_select 0, %s8, %s6
  // Predicated region
  $region2: #{mlp_autoencoder_forward.1} parent=0 // pred_check
    _
  $region3: #{mlp_autoencoder_forward.1} parent=0 // pred_check_branch
    %11 = sbr.rel (0) target = $region5
  $region4: #{mlp_autoencoder_forward.1} parent=0 // pred_region
    _
  $region5: #{mlp_autoencoder_forward.1} parent=0 // pred_fallthru
    _
  // Predicated region
  $region6: #{mlp_autoencoder_forward.1} parent=0 // pred_check
    _
  $region7: #{mlp_autoencoder_forward.1} parent=0 // pred_check_branch
    %13 = sbr.rel (0) target = $region9
  $region8: #{mlp_autoencoder_forward.1} parent=0 // pred_region
    _
  $region9: #{mlp_autoencoder_forward.1} parent=0 // pred_fallthru
    _
  // Predicated region
  $region10: #{mlp_autoencoder_forward.1} parent=0 // pred_check
    _
  $region11: #{mlp_autoencoder_forward.1} parent=0 // pred_check_branch
    %15 = sbr.rel (0) target = $region13
  $region12: #{mlp_autoencoder_forward.1} parent=0 // pred_region
    _
  $region13: #{mlp_autoencoder_forward.1} parent=0 // pred_fallthru
    _
  // Predicated region
  $region14: #{mlp_autoencoder_forward.1} parent=0 // pred_check
    _
  $region15: #{mlp_autoencoder_forward.1} parent=0 // pred_check_branch
    %17 = sbr.rel (0) target = $region17
  $region16: #{mlp_autoencoder_forward.1} parent=0 // pred_region
    _
  $region17: #{mlp_autoencoder_forward.1} parent=0 // pred_fallthru
    _
  // Predicated region
  $region18: #{mlp_autoencoder_forward.1} parent=0 // pred_check
    _
  $region19: #{mlp_autoencoder_forward.1} parent=0 // pred_check_branch
    %19 = sbr.rel (0) target = $region21
  $region20: #{mlp_autoencoder_forward.1} parent=0 // pred_region
    _
  $region21: #{mlp_autoencoder_forward.1} parent=0 // pred_fallthru
    _
  %v21 = vld [vmem:[%s0] sm:$0xf]
  %v22 = vld [vmem:[%s0 + $0x4] sm:$0xf]
  %v23 = vld [vmem:[%s1] sm:$0xf]
  %v24 = vld [vmem:[%s1 + $0x4] sm:$0xf]
  %v25 = vld [vmem:[%s1 + $0x8] sm:$0xf]
  %v26 = vld [vmem:[%s1 + $0xc] sm:$0xf]
  %v27 = vld [vmem:[%s2] sm:$0x1]
  %v29 = vlaneseq
  %v30 = vshrl.u32 %v29, 7
  %v31 = vsub.s32 0, %v30
  %v32 = vrot.slane %v27, %v31
  %v36 = vunpack.c.l.b16 %v21
  %v37 = vunpack.c.l.b16 %v22
  %v38 = vpack.c.b16 %v37, %v36
  %v43 = vunpack.c.l.b16 %v23
  %v44 = vunpack.c.l.b16 %v24
  %v45 = vunpack.c.l.b16 %v25
  %v46 = vunpack.c.l.b16 %v26
  %v47 = vpack.c.b16 %v44, %v43
  %v48 = vpack.c.b16 %v46, %v45
  %vm51 = vcmask 261120
  %v53 = vsel %vm51, %v38, 0
  %55 = vmatprep.subr.bf16.mxu0 0
  %56 = vmatpush1.bf16.msra.mxu0 %v47
  %57 = vmatprep.subr.bf16.mxu0 0
  %58 = vmatpush1.bf16.msra.mxu0 %v48
  %59 = vmatprep.subr.bf16.mxu0 0
  %60 = vmatpush1.bf16.msra.mxu0 0
  %61 = vmatprep.subr.bf16.mxu0 0
  %62 = vmatpush1.bf16.msra.mxu0 0
  %63 = vmatprep.subr.bf16.mxu0 0
  %64 = vmatpush1.bf16.msra.mxu0 0
  %65 = vmatprep.subr.bf16.mxu0 0
  %66 = vmatpush1.bf16.msra.mxu0 0
  %67 = vmatprep.subr.bf16.mxu0 0
  %68 = vmatpush1.bf16.msra.mxu0 0
  %69 = vmatprep.subr.bf16.mxu0 0
  %70 = vmatpush1.bf16.msra.mxu0 0
  %71 = vmatprep.subr.bf16.mxu0 0
  %72 = vmatpush1.bf16.msra.mxu0 0
  %73 = vmatprep.subr.bf16.mxu0 0
  %74 = vmatpush1.bf16.msra.mxu0 0
  %75 = vmatprep.subr.bf16.mxu0 0
  %76 = vmatpush1.bf16.msra.mxu0 0
  %77 = vmatprep.subr.bf16.mxu0 0
  %78 = vmatpush1.bf16.msra.mxu0 0
  %79 = vmatprep.subr.bf16.mxu0 0
  %80 = vmatpush1.bf16.msra.mxu0 0
  %81 = vmatprep.subr.bf16.mxu0 0
  %82 = vmatpush1.bf16.msra.mxu0 0
  %83 = vmatprep.subr.bf16.mxu0 0
  %84 = vmatpush1.bf16.msra.mxu0 0
  %85 = vmatprep.subr.bf16.mxu0 0
  %86 = vmatpush1.bf16.msra.mxu0 0
  %87 = vmatprep.mubr.bf16.mxu0 0
  %88 = vmatmul.mubr.bf16.gmra.mrb[0].mxu0 %v53
  %v89 = vpop.f32.mrb[0].mxu0
  %v90 = vadd.f32 %v32, %v89
  %v91 = vpop.f32.mrb[0].mxu0
  %v92 = vpop.f32.mrb[0].mxu0
  %v93 = vadd.f32 %v32, %v92
  %v94 = vpop.f32.mrb[0].mxu0
  %95 = vdwg.mxu0
  %vm96 = vcmp.gt.f32.partialorder %v90, 0.0
  %vm97 = vcmp.gt.f32.partialorder %v93, 0.0
  %v98 = vmul.f32 %v90, 0.01
  %v99 = vmul.f32 %v93, 0.01
  %v100 = vsel %vm96, %v90, %v98
  %v101 = vsel %vm97, %v93, %v99
  %v102 = vpack.c.bf16 %v101, %v100
  %v103 = vld [vmem:[%s3] sm:$0xf]
  %v104 = vld [vmem:[%s3 + $0x4] sm:$0xf]
  %v105 = vld [vmem:[%s3 + $0x8] sm:$0xf]
  %v106 = vld [vmem:[%s3 + $0xc] sm:$0xf]
  %v107 = vld [vmem:[%s3 + $0x10] sm:$0xf]
  %v108 = vld [vmem:[%s3 + $0x14] sm:$0xf]
  %v109 = vld [vmem:[%s3 + $0x18] sm:$0xf]
  %v110 = vld [vmem:[%s3 + $0x1c] sm:$0xf]
  %v111 = vld [vmem:[%s3 + $0x20] sm:$0xf]
  %v112 = vld [vmem:[%s3 + $0x24] sm:$0xf]
  %v113 = vld [vmem:[%s3 + $0x28] sm:$0xf]
  %v114 = vld [vmem:[%s3 + $0x2c] sm:$0xf]
  %v115 = vld [vmem:[%s3 + $0x30] sm:$0xf]
  %v116 = vld [vmem:[%s3 + $0x34] sm:$0xf]
  %v117 = vld [vmem:[%s3 + $0x38] sm:$0xf]
  %v118 = vld [vmem:[%s3 + $0x3c] sm:$0xf]
  %v119 = vld [vmem:[%s4] sm:$0x1]
  %v121 = vlaneseq
  %v122 = vshrl.u32 %v121, 7
  %v123 = vsub.s32 0, %v122
  %v124 = vrot.slane %v119, %v123
  %v142 = vunpack.c.l.b16 %v103
  %v143 = vunpack.c.l.b16 %v104
  %v144 = vunpack.c.l.b16 %v105
  %v145 = vunpack.c.l.b16 %v106
  %v146 = vunpack.c.l.b16 %v107
  %v147 = vunpack.c.l.b16 %v108
  %v148 = vunpack.c.l.b16 %v109
  %v149 = vunpack.c.l.b16 %v110
  %v150 = vunpack.c.l.b16 %v111
  %v151 = vunpack.c.l.b16 %v112
  %v152 = vunpack.c.l.b16 %v113
  %v153 = vunpack.c.l.b16 %v114
  %v154 = vunpack.c.l.b16 %v115
  %v155 = vunpack.c.l.b16 %v116
  %v156 = vunpack.c.l.b16 %v117
  %v157 = vunpack.c.l.b16 %v118
  %v158 = vpack.c.b16 %v143, %v142
  %v159 = vpack.c.b16 %v145, %v144
  %v160 = vpack.c.b16 %v147, %v146
  %v161 = vpack.c.b16 %v149, %v148
  %v162 = vpack.c.b16 %v151, %v150
  %v163 = vpack.c.b16 %v153, %v152
  %v164 = vpack.c.b16 %v155, %v154
  %v165 = vpack.c.b16 %v157, %v156
  %174 = vmatprep.subr.bf16.mxu0 0
  %175 = vmatpush1.bf16.msra.mxu0 %v158
  %176 = vmatprep.subr.bf16.mxu0 0
  %177 = vmatpush1.bf16.msra.mxu0 %v159
  %178 = vmatprep.subr.bf16.mxu0 0
  %179 = vmatpush1.bf16.msra.mxu0 %v160
  %180 = vmatprep.subr.bf16.mxu0 0
  %181 = vmatpush1.bf16.msra.mxu0 %v161
  %182 = vmatprep.subr.bf16.mxu0 0
  %183 = vmatpush1.bf16.msra.mxu0 %v162
  %184 = vmatprep.subr.bf16.mxu0 0
  %185 = vmatpush1.bf16.msra.mxu0 %v163
  %186 = vmatprep.subr.bf16.mxu0 0
  %187 = vmatpush1.bf16.msra.mxu0 %v164
  %188 = vmatprep.subr.bf16.mxu0 0
  %189 = vmatpush1.bf16.msra.mxu0 %v165
  %190 = vmatprep.subr.bf16.mxu0 0
  %191 = vmatpush1.bf16.msra.mxu0 0
  %192 = vmatprep.subr.bf16.mxu0 0
  %193 = vmatpush1.bf16.msra.mxu0 0
  %194 = vmatprep.subr.bf16.mxu0 0
  %195 = vmatpush1.bf16.msra.mxu0 0
  %196 = vmatprep.subr.bf16.mxu0 0
  %197 = vmatpush1.bf16.msra.mxu0 0
  %198 = vmatprep.subr.bf16.mxu0 0
  %199 = vmatpush1.bf16.msra.mxu0 0
  %200 = vmatprep.subr.bf16.mxu0 0
  %201 = vmatpush1.bf16.msra.mxu0 0
  %202 = vmatprep.subr.bf16.mxu0 0
  %203 = vmatpush1.bf16.msra.mxu0 0
  %204 = vmatprep.subr.bf16.mxu0 0
  %205 = vmatpush1.bf16.msra.mxu0 0
  %206 = vmatprep.mubr.bf16.mxu0 0
  %207 = vmatmul.mubr.bf16.gmra.mrb[0].mxu0 %v102
  %v208 = vpop.f32.mrb[0].mxu0
  %v209 = vadd.f32 %v124, %v208
  %v210 = vpop.f32.mrb[0].mxu0
  %v211 = vpop.f32.mrb[0].mxu0
  %v212 = vadd.f32 %v124, %v211
  %v213 = vpop.f32.mrb[0].mxu0
  %214 = vdwg.mxu0
  %vm215 = vcmp.gt.f32.partialorder %v209, 0.0
  %vm216 = vcmp.gt.f32.partialorder %v212, 0.0
  %v217 = vmul.f32 %v209, 0.01
  %v218 = vmul.f32 %v212, 0.01
  %v219 = vsel %vm215, %v209, %v217
  %v220 = vsel %vm216, %v212, %v218
  %v221 = vpack.c.bf16 %v220, %v219
  %s222 = scalar_lea.vmem %s3, 64
  %v223 = vld [vmem:[%s222] sm:$0xf]
  %v224 = vld [vmem:[%s222 + $0x4] sm:$0xf]
  %v225 = vld [vmem:[%s222 + $0x8] sm:$0xf]
  %v226 = vld [vmem:[%s222 + $0xc] sm:$0xf]
  %v227 = vld [vmem:[%s222 + $0x10] sm:$0xf]
  %v228 = vld [vmem:[%s222 + $0x14] sm:$0xf]
  %v229 = vld [vmem:[%s222 + $0x18] sm:$0xf]
  %v230 = vld [vmem:[%s222 + $0x1c] sm:$0xf]
  %v231 = vld [vmem:[%s222 + $0x20] sm:$0xf]
  %v232 = vld [vmem:[%s222 + $0x24] sm:$0xf]
  %v233 = vld [vmem:[%s222 + $0x28] sm:$0xf]
  %v234 = vld [vmem:[%s222 + $0x2c] sm:$0xf]
  %v235 = vld [vmem:[%s222 + $0x30] sm:$0xf]
  %v236 = vld [vmem:[%s222 + $0x34] sm:$0xf]
  %v237 = vld [vmem:[%s222 + $0x38] sm:$0xf]
  %v238 = vld [vmem:[%s222 + $0x3c] sm:$0xf]
  %s239 = scalar_lea.vmem %s4, 1
  %v240 = vld [vmem:[%s239] sm:$0x1]
  %v242 = vlaneseq
  %v243 = vshrl.u32 %v242, 7
  %v244 = vsub.s32 0, %v243
  %v245 = vrot.slane %v240, %v244
  %v263 = vunpack.c.l.b16 %v223
  %v264 = vunpack.c.l.b16 %v224
  %v265 = vunpack.c.l.b16 %v225
  %v266 = vunpack.c.l.b16 %v226
  %v267 = vunpack.c.l.b16 %v227
  %v268 = vunpack.c.l.b16 %v228
  %v269 = vunpack.c.l.b16 %v229
  %v270 = vunpack.c.l.b16 %v230
  %v271 = vunpack.c.l.b16 %v231
  %v272 = vunpack.c.l.b16 %v232
  %v273 = vunpack.c.l.b16 %v233
  %v274 = vunpack.c.l.b16 %v234
  %v275 = vunpack.c.l.b16 %v235
  %v276 = vunpack.c.l.b16 %v236
  %v277 = vunpack.c.l.b16 %v237
  %v278 = vunpack.c.l.b16 %v238
  %v279 = vpack.c.b16 %v264, %v263
  %v280 = vpack.c.b16 %v266, %v265
  %v281 = vpack.c.b16 %v268, %v267
  %v282 = vpack.c.b16 %v270, %v269
  %v283 = vpack.c.b16 %v272, %v271
  %v284 = vpack.c.b16 %v274, %v273
  %v285 = vpack.c.b16 %v276, %v275
  %v286 = vpack.c.b16 %v278, %v277
  %295 = vmatprep.subr.bf16.mxu0 0
  %296 = vmatpush1.bf16.msra.mxu0 %v279
  %297 = vmatprep.subr.bf16.mxu0 0
  %298 = vmatpush1.bf16.msra.mxu0 %v280
  %299 = vmatprep.subr.bf16.mxu0 0
  %300 = vmatpush1.bf16.msra.mxu0 %v281
  %301 = vmatprep.subr.bf16.mxu0 0
  %302 = vmatpush1.bf16.msra.mxu0 %v282
  %303 = vmatprep.subr.bf16.mxu0 0
  %304 = vmatpush1.bf16.msra.mxu0 %v283
  %305 = vmatprep.subr.bf16.mxu0 0
  %306 = vmatpush1.bf16.msra.mxu0 %v284
  %307 = vmatprep.subr.bf16.mxu0 0
  %308 = vmatpush1.bf16.msra.mxu0 %v285
  %309 = vmatprep.subr.bf16.mxu0 0
  %310 = vmatpush1.bf16.msra.mxu0 %v286
  %311 = vmatprep.subr.bf16.mxu0 0
  %312 = vmatpush1.bf16.msra.mxu0 0
  %313 = vmatprep.subr.bf16.mxu0 0
  %314 = vmatpush1.bf16.msra.mxu0 0
  %315 = vmatprep.subr.bf16.mxu0 0
  %316 = vmatpush1.bf16.msra.mxu0 0
  %317 = vmatprep.subr.bf16.mxu0 0
  %318 = vmatpush1.bf16.msra.mxu0 0
  %319 = vmatprep.subr.bf16.mxu0 0
  %320 = vmatpush1.bf16.msra.mxu0 0
  %321 = vmatprep.subr.bf16.mxu0 0
  %322 = vmatpush1.bf16.msra.mxu0 0
  %323 = vmatprep.subr.bf16.mxu0 0
  %324 = vmatpush1.bf16.msra.mxu0 0
  %325 = vmatprep.subr.bf16.mxu0 0
  %326 = vmatpush1.bf16.msra.mxu0 0
  %327 = vmatprep.mubr.bf16.mxu0 0
  %328 = vmatmul.mubr.bf16.gmra.mrb[0].mxu0 %v221
  %v329 = vpop.f32.mrb[0].mxu0
  %v330 = vadd.f32 %v245, %v329
  %v331 = vpop.f32.mrb[0].mxu0
  %v332 = vpop.f32.mrb[0].mxu0
  %v333 = vadd.f32 %v245, %v332
  %v334 = vpop.f32.mrb[0].mxu0
  %335 = vdwg.mxu0
  %vm336 = vcmp.gt.f32.partialorder %v330, 0.0
  %vm337 = vcmp.gt.f32.partialorder %v333, 0.0
  %v338 = vmul.f32 %v330, 0.01
  %v339 = vmul.f32 %v333, 0.01
  %v340 = vsel %vm336, %v330, %v338
  %v341 = vsel %vm337, %v333, %v339
  %v342 = vpack.c.bf16 %v341, %v340
  %s343 = scalar_lea.vmem %s3, 128
  %v344 = vld [vmem:[%s343] sm:$0xf]
  %v345 = vld [vmem:[%s343 + $0x4] sm:$0xf]
  %v346 = vld [vmem:[%s343 + $0x8] sm:$0xf]
  %v347 = vld [vmem:[%s343 + $0xc] sm:$0xf]
  %v348 = vld [vmem:[%s343 + $0x10] sm:$0xf]
  %v349 = vld [vmem:[%s343 + $0x14] sm:$0xf]
  %v350 = vld [vmem:[%s343 + $0x18] sm:$0xf]
  %v351 = vld [vmem:[%s343 + $0x1c] sm:$0xf]
  %v352 = vld [vmem:[%s343 + $0x20] sm:$0xf]
  %v353 = vld [vmem:[%s343 + $0x24] sm:$0xf]
  %v354 = vld [vmem:[%s343 + $0x28] sm:$0xf]
  %v355 = vld [vmem:[%s343 + $0x2c] sm:$0xf]
  %v356 = vld [vmem:[%s343 + $0x30] sm:$0xf]
  %v357 = vld [vmem:[%s343 + $0x34] sm:$0xf]
  %v358 = vld [vmem:[%s343 + $0x38] sm:$0xf]
  %v359 = vld [vmem:[%s343 + $0x3c] sm:$0xf]
  %s360 = scalar_lea.vmem %s4, 2
  %v361 = vld [vmem:[%s360] sm:$0x1]
  %v363 = vlaneseq
  %v364 = vshrl.u32 %v363, 7
  %v365 = vsub.s32 0, %v364
  %v366 = vrot.slane %v361, %v365
  %v384 = vunpack.c.l.b16 %v344
  %v385 = vunpack.c.l.b16 %v345
  %v386 = vunpack.c.l.b16 %v346
  %v387 = vunpack.c.l.b16 %v347
  %v388 = vunpack.c.l.b16 %v348
  %v389 = vunpack.c.l.b16 %v349
  %v390 = vunpack.c.l.b16 %v350
  %v391 = vunpack.c.l.b16 %v351
  %v392 = vunpack.c.l.b16 %v352
  %v393 = vunpack.c.l.b16 %v353
  %v394 = vunpack.c.l.b16 %v354
  %v395 = vunpack.c.l.b16 %v355
  %v396 = vunpack.c.l.b16 %v356
  %v397 = vunpack.c.l.b16 %v357
  %v398 = vunpack.c.l.b16 %v358
  %v399 = vunpack.c.l.b16 %v359
  %v400 = vpack.c.b16 %v385, %v384
  %v401 = vpack.c.b16 %v387, %v386
  %v402 = vpack.c.b16 %v389, %v388
  %v403 = vpack.c.b16 %v391, %v390
  %v404 = vpack.c.b16 %v393, %v392
  %v405 = vpack.c.b16 %v395, %v394
  %v406 = vpack.c.b16 %v397, %v396
  %v407 = vpack.c.b16 %v399, %v398
  %416 = vmatprep.subr.bf16.mxu0 0
  %417 = vmatpush1.bf16.msra.mxu0 %v400
  %418 = vmatprep.subr.bf16.mxu0 0
  %419 = vmatpush1.bf16.msra.mxu0 %v401
  %420 = vmatprep.subr.bf16.mxu0 0
  %421 = vmatpush1.bf16.msra.mxu0 %v402
  %422 = vmatprep.subr.bf16.mxu0 0
  %423 = vmatpush1.bf16.msra.mxu0 %v403
  %424 = vmatprep.subr.bf16.mxu0 0
  %425 = vmatpush1.bf16.msra.mxu0 %v404
  %426 = vmatprep.subr.bf16.mxu0 0
  %427 = vmatpush1.bf16.msra.mxu0 %v405
  %428 = vmatprep.subr.bf16.mxu0 0
  %429 = vmatpush1.bf16.msra.mxu0 %v406
  %430 = vmatprep.subr.bf16.mxu0 0
  %431 = vmatpush1.bf16.msra.mxu0 %v407
  %432 = vmatprep.subr.bf16.mxu0 0
  %433 = vmatpush1.bf16.msra.mxu0 0
  %434 = vmatprep.subr.bf16.mxu0 0
  %435 = vmatpush1.bf16.msra.mxu0 0
  %436 = vmatprep.subr.bf16.mxu0 0
  %437 = vmatpush1.bf16.msra.mxu0 0
  %438 = vmatprep.subr.bf16.mxu0 0
  %439 = vmatpush1.bf16.msra.mxu0 0
  %440 = vmatprep.subr.bf16.mxu0 0
  %441 = vmatpush1.bf16.msra.mxu0 0
  %442 = vmatprep.subr.bf16.mxu0 0
  %443 = vmatpush1.bf16.msra.mxu0 0
  %444 = vmatprep.subr.bf16.mxu0 0
  %445 = vmatpush1.bf16.msra.mxu0 0
  %446 = vmatprep.subr.bf16.mxu0 0
  %447 = vmatpush1.bf16.msra.mxu0 0
  %448 = vmatprep.mubr.bf16.mxu0 0
  %449 = vmatmul.mubr.bf16.gmra.mrb[0].mxu0 %v342
  %v450 = vpop.f32.mrb[0].mxu0
  %v451 = vadd.f32 %v366, %v450
  %v452 = vpop.f32.mrb[0].mxu0
  %v453 = vpop.f32.mrb[0].mxu0
  %v454 = vadd.f32 %v366, %v453
  %v455 = vpop.f32.mrb[0].mxu0
  %456 = vdwg.mxu0
  %vm457 = vcmp.gt.f32.partialorder %v451, 0.0
  %vm458 = vcmp.gt.f32.partialorder %v454, 0.0
  %v459 = vmul.f32 %v451, 0.01
  %v460 = vmul.f32 %v454, 0.01
  %v461 = vsel %vm457, %v451, %v459
  %v462 = vsel %vm458, %v454, %v460
  %v463 = vpack.c.bf16 %v462, %v461
  %s464 = scalar_lea.vmem %s3, 192
  %v465 = vld [vmem:[%s464] sm:$0xf]
  %v466 = vld [vmem:[%s464 + $0x4] sm:$0xf]
  %v467 = vld [vmem:[%s464 + $0x8] sm:$0xf]
  %v468 = vld [vmem:[%s464 + $0xc] sm:$0xf]
  %v469 = vld [vmem:[%s464 + $0x10] sm:$0xf]
  %v470 = vld [vmem:[%s464 + $0x14] sm:$0xf]
  %v471 = vld [vmem:[%s464 + $0x18] sm:$0xf]
  %v472 = vld [vmem:[%s464 + $0x1c] sm:$0xf]
  %v473 = vld [vmem:[%s464 + $0x20] sm:$0xf]
  %v474 = vld [vmem:[%s464 + $0x24] sm:$0xf]
  %v475 = vld [vmem:[%s464 + $0x28] sm:$0xf]
  %v476 = vld [vmem:[%s464 + $0x2c] sm:$0xf]
  %v477 = vld [vmem:[%s464 + $0x30] sm:$0xf]
  %v478 = vld [vmem:[%s464 + $0x34] sm:$0xf]
  %v479 = vld [vmem:[%s464 + $0x38] sm:$0xf]
  %v480 = vld [vmem:[%s464 + $0x3c] sm:$0xf]
  %s481 = scalar_lea.vmem %s4, 3
  %v482 = vld [vmem:[%s481] sm:$0x1]
  %v484 = vlaneseq
  %v485 = vshrl.u32 %v484, 7
  %v486 = vsub.s32 0, %v485
  %v487 = vrot.slane %v482, %v486
  %v505 = vunpack.c.l.b16 %v465
  %v506 = vunpack.c.l.b16 %v466
  %v507 = vunpack.c.l.b16 %v467
  %v508 = vunpack.c.l.b16 %v468
  %v509 = vunpack.c.l.b16 %v469
  %v510 = vunpack.c.l.b16 %v470
  %v511 = vunpack.c.l.b16 %v471
  %v512 = vunpack.c.l.b16 %v472
  %v513 = vunpack.c.l.b16 %v473
  %v514 = vunpack.c.l.b16 %v474
  %v515 = vunpack.c.l.b16 %v475
  %v516 = vunpack.c.l.b16 %v476
  %v517 = vunpack.c.l.b16 %v477
  %v518 = vunpack.c.l.b16 %v478
  %v519 = vunpack.c.l.b16 %v479
  %v520 = vunpack.c.l.b16 %v480
  %v521 = vpack.c.b16 %v506, %v505
  %v522 = vpack.c.b16 %v508, %v507
  %v523 = vpack.c.b16 %v510, %v509
  %v524 = vpack.c.b16 %v512, %v511
  %v525 = vpack.c.b16 %v514, %v513
  %v526 = vpack.c.b16 %v516, %v515
  %v527 = vpack.c.b16 %v518, %v517
  %v528 = vpack.c.b16 %v520, %v519
  %537 = vmatprep.subr.bf16.mxu0 0
  %538 = vmatpush1.bf16.msra.mxu0 %v521
  %539 = vmatprep.subr.bf16.mxu0 0
  %540 = vmatpush1.bf16.msra.mxu0 %v522
  %541 = vmatprep.subr.bf16.mxu0 0
  %542 = vmatpush1.bf16.msra.mxu0 %v523
  %543 = vmatprep.subr.bf16.mxu0 0
  %544 = vmatpush1.bf16.msra.mxu0 %v524
  %545 = vmatprep.subr.bf16.mxu0 0
  %546 = vmatpush1.bf16.msra.mxu0 %v525
  %547 = vmatprep.subr.bf16.mxu0 0
  %548 = vmatpush1.bf16.msra.mxu0 %v526
  %549 = vmatprep.subr.bf16.mxu0 0
  %550 = vmatpush1.bf16.msra.mxu0 %v527
  %551 = vmatprep.subr.bf16.mxu0 0
  %552 = vmatpush1.bf16.msra.mxu0 %v528
  %553 = vmatprep.subr.bf16.mxu0 0
  %554 = vmatpush1.bf16.msra.mxu0 0
  %555 = vmatprep.subr.bf16.mxu0 0
  %556 = vmatpush1.bf16.msra.mxu0 0
  %557 = vmatprep.subr.bf16.mxu0 0
  %558 = vmatpush1.bf16.msra.mxu0 0
  %559 = vmatprep.subr.bf16.mxu0 0
  %560 = vmatpush1.bf16.msra.mxu0 0
  %561 = vmatprep.subr.bf16.mxu0 0
  %562 = vmatpush1.bf16.msra.mxu0 0
  %563 = vmatprep.subr.bf16.mxu0 0
  %564 = vmatpush1.bf16.msra.mxu0 0
  %565 = vmatprep.subr.bf16.mxu0 0
  %566 = vmatpush1.bf16.msra.mxu0 0
  %567 = vmatprep.subr.bf16.mxu0 0
  %568 = vmatpush1.bf16.msra.mxu0 0
  %569 = vmatprep.mubr.bf16.mxu0 0
  %570 = vmatmul.mubr.bf16.gmra.mrb[0].mxu0 %v463
  %v571 = vpop.f32.mrb[0].mxu0
  %v572 = vadd.f32 %v487, %v571
  %v573 = vpop.f32.mrb[0].mxu0
  %v574 = vpop.f32.mrb[0].mxu0
  %v575 = vadd.f32 %v487, %v574
  %v576 = vpop.f32.mrb[0].mxu0
  %577 = vdwg.mxu0
  %v578 = vpack.c.bf16 %v575, %v572
  %s579 = scalar_lea.vmem %s3, 256
  %v580 = vld [vmem:[%s579] sm:$0xf]
  %v581 = vld [vmem:[%s579 + $0x4] sm:$0xf]
  %v582 = vld [vmem:[%s579 + $0x8] sm:$0xf]
  %v583 = vld [vmem:[%s579 + $0xc] sm:$0xf]
  %v584 = vld [vmem:[%s579 + $0x10] sm:$0xf]
  %v585 = vld [vmem:[%s579 + $0x14] sm:$0xf]
  %v586 = vld [vmem:[%s579 + $0x18] sm:$0xf]
  %v587 = vld [vmem:[%s579 + $0x1c] sm:$0xf]
  %v588 = vld [vmem:[%s579 + $0x20] sm:$0xf]
  %v589 = vld [vmem:[%s579 + $0x24] sm:$0xf]
  %v590 = vld [vmem:[%s579 + $0x28] sm:$0xf]
  %v591 = vld [vmem:[%s579 + $0x2c] sm:$0xf]
  %v592 = vld [vmem:[%s579 + $0x30] sm:$0xf]
  %v593 = vld [vmem:[%s579 + $0x34] sm:$0xf]
  %v594 = vld [vmem:[%s579 + $0x38] sm:$0xf]
  %v595 = vld [vmem:[%s579 + $0x3c] sm:$0xf]
  %s596 = scalar_lea.vmem %s4, 4
  %v597 = vld [vmem:[%s596] sm:$0x1]
  %v599 = vlaneseq
  %v600 = vshrl.u32 %v599, 7
  %v601 = vsub.s32 0, %v600
  %v602 = vrot.slane %v597, %v601
  %v620 = vunpack.c.l.b16 %v580
  %v621 = vunpack.c.l.b16 %v581
  %v622 = vunpack.c.l.b16 %v582
  %v623 = vunpack.c.l.b16 %v583
  %v624 = vunpack.c.l.b16 %v584
  %v625 = vunpack.c.l.b16 %v585
  %v626 = vunpack.c.l.b16 %v586
  %v627 = vunpack.c.l.b16 %v587
  %v628 = vunpack.c.l.b16 %v588
  %v629 = vunpack.c.l.b16 %v589
  %v630 = vunpack.c.l.b16 %v590
  %v631 = vunpack.c.l.b16 %v591
  %v632 = vunpack.c.l.b16 %v592
  %v633 = vunpack.c.l.b16 %v593
  %v634 = vunpack.c.l.b16 %v594
  %v635 = vunpack.c.l.b16 %v595
  %v636 = vpack.c.b16 %v621, %v620
  %v637 = vpack.c.b16 %v623, %v622
  %v638 = vpack.c.b16 %v625, %v624
  %v639 = vpack.c.b16 %v627, %v626
  %v640 = vpack.c.b16 %v629, %v628
  %v641 = vpack.c.b16 %v631, %v630
  %v642 = vpack.c.b16 %v633, %v632
  %v643 = vpack.c.b16 %v635, %v634
  %652 = vmatprep.subr.bf16.mxu0 0
  %653 = vmatpush1.bf16.msra.mxu0 %v636
  %654 = vmatprep.subr.bf16.mxu0 0
  %655 = vmatpush1.bf16.msra.mxu0 %v637
  %656 = vmatprep.subr.bf16.mxu0 0
  %657 = vmatpush1.bf16.msra.mxu0 %v638
  %658 = vmatprep.subr.bf16.mxu0 0
  %659 = vmatpush1.bf16.msra.mxu0 %v639
  %660 = vmatprep.subr.bf16.mxu0 0
  %661 = vmatpush1.bf16.msra.mxu0 %v640
  %662 = vmatprep.subr.bf16.mxu0 0
  %663 = vmatpush1.bf16.msra.mxu0 %v641
  %664 = vmatprep.subr.bf16.mxu0 0
  %665 = vmatpush1.bf16.msra.mxu0 %v642
  %666 = vmatprep.subr.bf16.mxu0 0
  %667 = vmatpush1.bf16.msra.mxu0 %v643
  %668 = vmatprep.subr.bf16.mxu0 0
  %669 = vmatpush1.bf16.msra.mxu0 0
  %670 = vmatprep.subr.bf16.mxu0 0
  %671 = vmatpush1.bf16.msra.mxu0 0
  %672 = vmatprep.subr.bf16.mxu0 0
  %673 = vmatpush1.bf16.msra.mxu0 0
  %674 = vmatprep.subr.bf16.mxu0 0
  %675 = vmatpush1.bf16.msra.mxu0 0
  %676 = vmatprep.subr.bf16.mxu0 0
  %677 = vmatpush1.bf16.msra.mxu0 0
  %678 = vmatprep.subr.bf16.mxu0 0
  %679 = vmatpush1.bf16.msra.mxu0 0
  %680 = vmatprep.subr.bf16.mxu0 0
  %681 = vmatpush1.bf16.msra.mxu0 0
  %682 = vmatprep.subr.bf16.mxu0 0
  %683 = vmatpush1.bf16.msra.mxu0 0
  %684 = vmatprep.mubr.bf16.mxu0 0
  %685 = vmatmul.mubr.bf16.gmra.mrb[0].mxu0 %v578
  %v686 = vpop.f32.mrb[0].mxu0
  %v687 = vadd.f32 %v602, %v686
  %v688 = vpop.f32.mrb[0].mxu0
  %v689 = vpop.f32.mrb[0].mxu0
  %v690 = vadd.f32 %v602, %v689
  %v691 = vpop.f32.mrb[0].mxu0
  %692 = vdwg.mxu0
  %vm693 = vcmp.gt.f32.partialorder %v687, 0.0
  %vm694 = vcmp.gt.f32.partialorder %v690, 0.0
  %v695 = vmul.f32 %v687, 0.01
  %v696 = vmul.f32 %v690, 0.01
  %v697 = vsel %vm693, %v687, %v695
  %v698 = vsel %vm694, %v690, %v696
  %v699 = vpack.c.bf16 %v698, %v697
  %s700 = scalar_lea.vmem %s3, 320
  %v701 = vld [vmem:[%s700] sm:$0xf]
  %v702 = vld [vmem:[%s700 + $0x4] sm:$0xf]
  %v703 = vld [vmem:[%s700 + $0x8] sm:$0xf]
  %v704 = vld [vmem:[%s700 + $0xc] sm:$0xf]
  %v705 = vld [vmem:[%s700 + $0x10] sm:$0xf]
  %v706 = vld [vmem:[%s700 + $0x14] sm:$0xf]
  %v707 = vld [vmem:[%s700 + $0x18] sm:$0xf]
  %v708 = vld [vmem:[%s700 + $0x1c] sm:$0xf]
  %v709 = vld [vmem:[%s700 + $0x20] sm:$0xf]
  %v710 = vld [vmem:[%s700 + $0x24] sm:$0xf]
  %v711 = vld [vmem:[%s700 + $0x28] sm:$0xf]
  %v712 = vld [vmem:[%s700 + $0x2c] sm:$0xf]
  %v713 = vld [vmem:[%s700 + $0x30] sm:$0xf]
  %v714 = vld [vmem:[%s700 + $0x34] sm:$0xf]
  %v715 = vld [vmem:[%s700 + $0x38] sm:$0xf]
  %v716 = vld [vmem:[%s700 + $0x3c] sm:$0xf]
  %s717 = scalar_lea.vmem %s4, 5
  %v718 = vld [vmem:[%s717] sm:$0x1]
  %v720 = vlaneseq
  %v721 = vshrl.u32 %v720, 7
  %v722 = vsub.s32 0, %v721
  %v723 = vrot.slane %v718, %v722
  %v741 = vunpack.c.l.b16 %v701
  %v742 = vunpack.c.l.b16 %v702
  %v743 = vunpack.c.l.b16 %v703
  %v744 = vunpack.c.l.b16 %v704
  %v745 = vunpack.c.l.b16 %v705
  %v746 = vunpack.c.l.b16 %v706
  %v747 = vunpack.c.l.b16 %v707
  %v748 = vunpack.c.l.b16 %v708
  %v749 = vunpack.c.l.b16 %v709
  %v750 = vunpack.c.l.b16 %v710
  %v751 = vunpack.c.l.b16 %v711
  %v752 = vunpack.c.l.b16 %v712
  %v753 = vunpack.c.l.b16 %v713
  %v754 = vunpack.c.l.b16 %v714
  %v755 = vunpack.c.l.b16 %v715
  %v756 = vunpack.c.l.b16 %v716
  %v757 = vpack.c.b16 %v742, %v741
  %v758 = vpack.c.b16 %v744, %v743
  %v759 = vpack.c.b16 %v746, %v745
  %v760 = vpack.c.b16 %v748, %v747
  %v761 = vpack.c.b16 %v750, %v749
  %v762 = vpack.c.b16 %v752, %v751
  %v763 = vpack.c.b16 %v754, %v753
  %v764 = vpack.c.b16 %v756, %v755
  %773 = vmatprep.subr.bf16.mxu0 0
  %774 = vmatpush1.bf16.msra.mxu0 %v757
  %775 = vmatprep.subr.bf16.mxu0 0
  %776 = vmatpush1.bf16.msra.mxu0 %v758
  %777 = vmatprep.subr.bf16.mxu0 0
  %778 = vmatpush1.bf16.msra.mxu0 %v759
  %779 = vmatprep.subr.bf16.mxu0 0
  %780 = vmatpush1.bf16.msra.mxu0 %v760
  %781 = vmatprep.subr.bf16.mxu0 0
  %782 = vmatpush1.bf16.msra.mxu0 %v761
  %783 = vmatprep.subr.bf16.mxu0 0
  %784 = vmatpush1.bf16.msra.mxu0 %v762
  %785 = vmatprep.subr.bf16.mxu0 0
  %786 = vmatpush1.bf16.msra.mxu0 %v763
  %787 = vmatprep.subr.bf16.mxu0 0
  %788 = vmatpush1.bf16.msra.mxu0 %v764
  %789 = vmatprep.subr.bf16.mxu0 0
  %790 = vmatpush1.bf16.msra.mxu0 0
  %791 = vmatprep.subr.bf16.mxu0 0
  %792 = vmatpush1.bf16.msra.mxu0 0
  %793 = vmatprep.subr.bf16.mxu0 0
  %794 = vmatpush1.bf16.msra.mxu0 0
  %795 = vmatprep.subr.bf16.mxu0 0
  %796 = vmatpush1.bf16.msra.mxu0 0
  %797 = vmatprep.subr.bf16.mxu0 0
  %798 = vmatpush1.bf16.msra.mxu0 0
  %799 = vmatprep.subr.bf16.mxu0 0
  %800 = vmatpush1.bf16.msra.mxu0 0
  %801 = vmatprep.subr.bf16.mxu0 0
  %802 = vmatpush1.bf16.msra.mxu0 0
  %803 = vmatprep.subr.bf16.mxu0 0
  %804 = vmatpush1.bf16.msra.mxu0 0
  %805 = vmatprep.mubr.bf16.mxu0 0
  %806 = vmatmul.mubr.bf16.gmra.mrb[0].mxu0 %v699
  %v807 = vpop.f32.mrb[0].mxu0
  %v808 = vadd.f32 %v723, %v807
  %v809 = vpop.f32.mrb[0].mxu0
  %v810 = vpop.f32.mrb[0].mxu0
  %v811 = vadd.f32 %v723, %v810
  %v812 = vpop.f32.mrb[0].mxu0
  %813 = vdwg.mxu0
  %vm814 = vcmp.gt.f32.partialorder %v808, 0.0
  %vm815 = vcmp.gt.f32.partialorder %v811, 0.0
  %v816 = vmul.f32 %v808, 0.01
  %v817 = vmul.f32 %v811, 0.01
  %v818 = vsel %vm814, %v808, %v816
  %v819 = vsel %vm815, %v811, %v817
  %v820 = vpack.c.bf16 %v819, %v818
  %s821 = scalar_lea.vmem %s3, 384
  %v822 = vld [vmem:[%s821] sm:$0xf]
  %v823 = vld [vmem:[%s821 + $0x4] sm:$0xf]
  %v824 = vld [vmem:[%s821 + $0x8] sm:$0xf]
  %v825 = vld [vmem:[%s821 + $0xc] sm:$0xf]
  %v826 = vld [vmem:[%s821 + $0x10] sm:$0xf]
  %v827 = vld [vmem:[%s821 + $0x14] sm:$0xf]
  %v828 = vld [vmem:[%s821 + $0x18] sm:$0xf]
  %v829 = vld [vmem:[%s821 + $0x1c] sm:$0xf]
  %v830 = vld [vmem:[%s821 + $0x20] sm:$0xf]
  %v831 = vld [vmem:[%s821 + $0x24] sm:$0xf]
  %v832 = vld [vmem:[%s821 + $0x28] sm:$0xf]
  %v833 = vld [vmem:[%s821 + $0x2c] sm:$0xf]
  %v834 = vld [vmem:[%s821 + $0x30] sm:$0xf]
  %v835 = vld [vmem:[%s821 + $0x34] sm:$0xf]
  %v836 = vld [vmem:[%s821 + $0x38] sm:$0xf]
  %v837 = vld [vmem:[%s821 + $0x3c] sm:$0xf]
  %s838 = scalar_lea.vmem %s4, 6
  %v839 = vld [vmem:[%s838] sm:$0x1]
  %v841 = vlaneseq
  %v842 = vshrl.u32 %v841, 7
  %v843 = vsub.s32 0, %v842
  %v844 = vrot.slane %v839, %v843
  %v862 = vunpack.c.l.b16 %v822
  %v863 = vunpack.c.l.b16 %v823
  %v864 = vunpack.c.l.b16 %v824
  %v865 = vunpack.c.l.b16 %v825
  %v866 = vunpack.c.l.b16 %v826
  %v867 = vunpack.c.l.b16 %v827
  %v868 = vunpack.c.l.b16 %v828
  %v869 = vunpack.c.l.b16 %v829
  %v870 = vunpack.c.l.b16 %v830
  %v871 = vunpack.c.l.b16 %v831
  %v872 = vunpack.c.l.b16 %v832
  %v873 = vunpack.c.l.b16 %v833
  %v874 = vunpack.c.l.b16 %v834
  %v875 = vunpack.c.l.b16 %v835
  %v876 = vunpack.c.l.b16 %v836
  %v877 = vunpack.c.l.b16 %v837
  %v878 = vpack.c.b16 %v863, %v862
  %v879 = vpack.c.b16 %v865, %v864
  %v880 = vpack.c.b16 %v867, %v866
  %v881 = vpack.c.b16 %v869, %v868
  %v882 = vpack.c.b16 %v871, %v870
  %v883 = vpack.c.b16 %v873, %v872
  %v884 = vpack.c.b16 %v875, %v874
  %v885 = vpack.c.b16 %v877, %v876
  %894 = vmatprep.subr.bf16.mxu0 0
  %895 = vmatpush1.bf16.msra.mxu0 %v878
  %896 = vmatprep.subr.bf16.mxu0 0
  %897 = vmatpush1.bf16.msra.mxu0 %v879
  %898 = vmatprep.subr.bf16.mxu0 0
  %899 = vmatpush1.bf16.msra.mxu0 %v880
  %900 = vmatprep.subr.bf16.mxu0 0
  %901 = vmatpush1.bf16.msra.mxu0 %v881
  %902 = vmatprep.subr.bf16.mxu0 0
  %903 = vmatpush1.bf16.msra.mxu0 %v882
  %904 = vmatprep.subr.bf16.mxu0 0
  %905 = vmatpush1.bf16.msra.mxu0 %v883
  %906 = vmatprep.subr.bf16.mxu0 0
  %907 = vmatpush1.bf16.msra.mxu0 %v884
  %908 = vmatprep.subr.bf16.mxu0 0
  %909 = vmatpush1.bf16.msra.mxu0 %v885
  %910 = vmatprep.subr.bf16.mxu0 0
  %911 = vmatpush1.bf16.msra.mxu0 0
  %912 = vmatprep.subr.bf16.mxu0 0
  %913 = vmatpush1.bf16.msra.mxu0 0
  %914 = vmatprep.subr.bf16.mxu0 0
  %915 = vmatpush1.bf16.msra.mxu0 0
  %916 = vmatprep.subr.bf16.mxu0 0
  %917 = vmatpush1.bf16.msra.mxu0 0
  %918 = vmatprep.subr.bf16.mxu0 0
  %919 = vmatpush1.bf16.msra.mxu0 0
  %920 = vmatprep.subr.bf16.mxu0 0
  %921 = vmatpush1.bf16.msra.mxu0 0
  %922 = vmatprep.subr.bf16.mxu0 0
  %923 = vmatpush1.bf16.msra.mxu0 0
  %924 = vmatprep.subr.bf16.mxu0 0
  %925 = vmatpush1.bf16.msra.mxu0 0
  %926 = vmatprep.mubr.bf16.mxu0 0
  %927 = vmatmul.mubr.bf16.gmra.mrb[0].mxu0 %v820
  %v928 = vpop.f32.mrb[0].mxu0
  %v929 = vadd.f32 %v844, %v928
  %v930 = vpop.f32.mrb[0].mxu0
  %v931 = vpop.f32.mrb[0].mxu0
  %v932 = vadd.f32 %v844, %v931
  %v933 = vpop.f32.mrb[0].mxu0
  %934 = vdwg.mxu0
  %vm935 = vcmp.gt.f32.partialorder %v929, 0.0
  %vm936 = vcmp.gt.f32.partialorder %v932, 0.0
  %v937 = vmul.f32 %v929, 0.01
  %v938 = vmul.f32 %v932, 0.01
  %v939 = vsel %vm935, %v929, %v937
  %v940 = vsel %vm936, %v932, %v938
  %v941 = vpack.c.bf16 %v940, %v939
  %s942 = scalar_lea.vmem %s3, 448
  %v943 = vld [vmem:[%s942] sm:$0xf]
  %v944 = vld [vmem:[%s942 + $0x4] sm:$0xf]
  %v945 = vld [vmem:[%s942 + $0x8] sm:$0xf]
  %v946 = vld [vmem:[%s942 + $0xc] sm:$0xf]
  %v947 = vld [vmem:[%s942 + $0x10] sm:$0xf]
  %v948 = vld [vmem:[%s942 + $0x14] sm:$0xf]
  %v949 = vld [vmem:[%s942 + $0x18] sm:$0xf]
  %v950 = vld [vmem:[%s942 + $0x1c] sm:$0xf]
  %v951 = vld [vmem:[%s942 + $0x20] sm:$0xf]
  %v952 = vld [vmem:[%s942 + $0x24] sm:$0xf]
  %v953 = vld [vmem:[%s942 + $0x28] sm:$0xf]
  %v954 = vld [vmem:[%s942 + $0x2c] sm:$0xf]
  %v955 = vld [vmem:[%s942 + $0x30] sm:$0xf]
  %v956 = vld [vmem:[%s942 + $0x34] sm:$0xf]
  %v957 = vld [vmem:[%s942 + $0x38] sm:$0xf]
  %v958 = vld [vmem:[%s942 + $0x3c] sm:$0xf]
  %s959 = scalar_lea.vmem %s4, 7
  %v960 = vld [vmem:[%s959] sm:$0x1]
  %v962 = vlaneseq
  %v963 = vshrl.u32 %v962, 7
  %v964 = vsub.s32 0, %v963
  %v965 = vrot.slane %v960, %v964
  %v983 = vunpack.c.l.b16 %v943
  %v984 = vunpack.c.l.b16 %v944
  %v985 = vunpack.c.l.b16 %v945
  %v986 = vunpack.c.l.b16 %v946
  %v987 = vunpack.c.l.b16 %v947
  %v988 = vunpack.c.l.b16 %v948
  %v989 = vunpack.c.l.b16 %v949
  %v990 = vunpack.c.l.b16 %v950
  %v991 = vunpack.c.l.b16 %v951
  %v992 = vunpack.c.l.b16 %v952
  %v993 = vunpack.c.l.b16 %v953
  %v994 = vunpack.c.l.b16 %v954
  %v995 = vunpack.c.l.b16 %v955
  %v996 = vunpack.c.l.b16 %v956
  %v997 = vunpack.c.l.b16 %v957
  %v998 = vunpack.c.l.b16 %v958
  %v999 = vpack.c.b16 %v984, %v983
  %v1000 = vpack.c.b16 %v986, %v985
  %v1001 = vpack.c.b16 %v988, %v987
  %v1002 = vpack.c.b16 %v990, %v989
  %v1003 = vpack.c.b16 %v992, %v991
  %v1004 = vpack.c.b16 %v994, %v993
  %v1005 = vpack.c.b16 %v996, %v995
  %v1006 = vpack.c.b16 %v998, %v997
  %1015 = vmatprep.subr.bf16.mxu0 0
  %1016 = vmatpush1.bf16.msra.mxu0 %v999
  %1017 = vmatprep.subr.bf16.mxu0 0
  %1018 = vmatpush1.bf16.msra.mxu0 %v1000
  %1019 = vmatprep.subr.bf16.mxu0 0
  %1020 = vmatpush1.bf16.msra.mxu0 %v1001
  %1021 = vmatprep.subr.bf16.mxu0 0
  %1022 = vmatpush1.bf16.msra.mxu0 %v1002
  %1023 = vmatprep.subr.bf16.mxu0 0
  %1024 = vmatpush1.bf16.msra.mxu0 %v1003
  %1025 = vmatprep.subr.bf16.mxu0 0
  %1026 = vmatpush1.bf16.msra.mxu0 %v1004
  %1027 = vmatprep.subr.bf16.mxu0 0
  %1028 = vmatpush1.bf16.msra.mxu0 %v1005
  %1029 = vmatprep.subr.bf16.mxu0 0
  %1030 = vmatpush1.bf16.msra.mxu0 %v1006
  %1031 = vmatprep.subr.bf16.mxu0 0
  %1032 = vmatpush1.bf16.msra.mxu0 0
  %1033 = vmatprep.subr.bf16.mxu0 0
  %1034 = vmatpush1.bf16.msra.mxu0 0
  %1035 = vmatprep.subr.bf16.mxu0 0
  %1036 = vmatpush1.bf16.msra.mxu0 0
  %1037 = vmatprep.subr.bf16.mxu0 0
  %1038 = vmatpush1.bf16.msra.mxu0 0
  %1039 = vmatprep.subr.bf16.mxu0 0
  %1040 = vmatpush1.bf16.msra.mxu0 0
  %1041 = vmatprep.subr.bf16.mxu0 0
  %1042 = vmatpush1.bf16.msra.mxu0 0
  %1043 = vmatprep.subr.bf16.mxu0 0
  %1044 = vmatpush1.bf16.msra.mxu0 0
  %1045 = vmatprep.subr.bf16.mxu0 0
  %1046 = vmatpush1.bf16.msra.mxu0 0
  %1047 = vmatprep.mubr.bf16.mxu0 0
  %1048 = vmatmul.mubr.bf16.gmra.mrb[0].mxu0 %v941
  %v1049 = vpop.f32.mrb[0].mxu0
  %v1050 = vadd.f32 %v965, %v1049
  %v1051 = vpop.f32.mrb[0].mxu0
  %v1052 = vpop.f32.mrb[0].mxu0
  %v1053 = vadd.f32 %v965, %v1052
  %v1054 = vpop.f32.mrb[0].mxu0
  %1055 = vdwg.mxu0
  %vm1056 = vcmp.gt.f32.partialorder %v1050, 0.0
  %vm1057 = vcmp.gt.f32.partialorder %v1053, 0.0
  %v1058 = vmul.f32 %v1050, 0.01
  %v1059 = vmul.f32 %v1053, 0.01
  %v1060 = vsel %vm1056, %v1050, %v1058
  %v1061 = vsel %vm1057, %v1053, %v1059
  %v1062 = vpack.c.bf16 %v1061, %v1060
  %s1063 = scalar_lea.vmem %s3, 512
  %v1064 = vld [vmem:[%s1063] sm:$0xf]
  %v1065 = vld [vmem:[%s1063 + $0x4] sm:$0xf]
  %v1066 = vld [vmem:[%s1063 + $0x8] sm:$0xf]
  %v1067 = vld [vmem:[%s1063 + $0xc] sm:$0xf]
  %v1068 = vld [vmem:[%s1063 + $0x10] sm:$0xf]
  %v1069 = vld [vmem:[%s1063 + $0x14] sm:$0xf]
  %v1070 = vld [vmem:[%s1063 + $0x18] sm:$0xf]
  %v1071 = vld [vmem:[%s1063 + $0x1c] sm:$0xf]
  %v1072 = vld [vmem:[%s1063 + $0x20] sm:$0xf]
  %v1073 = vld [vmem:[%s1063 + $0x24] sm:$0xf]
  %v1074 = vld [vmem:[%s1063 + $0x28] sm:$0xf]
  %v1075 = vld [vmem:[%s1063 + $0x2c] sm:$0xf]
  %v1076 = vld [vmem:[%s1063 + $0x30] sm:$0xf]
  %v1077 = vld [vmem:[%s1063 + $0x34] sm:$0xf]
  %v1078 = vld [vmem:[%s1063 + $0x38] sm:$0xf]
  %v1079 = vld [vmem:[%s1063 + $0x3c] sm:$0xf]
  %s1080 = scalar_lea.vmem %s4, 8
  %v1081 = vld [vmem:[%s1080] sm:$0x1]
  %v1083 = vlaneseq
  %v1084 = vshrl.u32 %v1083, 7
  %v1085 = vsub.s32 0, %v1084
  %v1086 = vrot.slane %v1081, %v1085
  %v1104 = vunpack.c.l.b16 %v1064
  %v1105 = vunpack.c.l.b16 %v1065
  %v1106 = vunpack.c.l.b16 %v1066
  %v1107 = vunpack.c.l.b16 %v1067
  %v1108 = vunpack.c.l.b16 %v1068
  %v1109 = vunpack.c.l.b16 %v1069
  %v1110 = vunpack.c.l.b16 %v1070
  %v1111 = vunpack.c.l.b16 %v1071
  %v1112 = vunpack.c.l.b16 %v1072
  %v1113 = vunpack.c.l.b16 %v1073
  %v1114 = vunpack.c.l.b16 %v1074
  %v1115 = vunpack.c.l.b16 %v1075
  %v1116 = vunpack.c.l.b16 %v1076
  %v1117 = vunpack.c.l.b16 %v1077
  %v1118 = vunpack.c.l.b16 %v1078
  %v1119 = vunpack.c.l.b16 %v1079
  %v1120 = vpack.c.b16 %v1105, %v1104
  %v1121 = vpack.c.b16 %v1107, %v1106
  %v1122 = vpack.c.b16 %v1109, %v1108
  %v1123 = vpack.c.b16 %v1111, %v1110
  %v1124 = vpack.c.b16 %v1113, %v1112
  %v1125 = vpack.c.b16 %v1115, %v1114
  %v1126 = vpack.c.b16 %v1117, %v1116
  %v1127 = vpack.c.b16 %v1119, %v1118
  %1136 = vmatprep.subr.bf16.mxu0 0
  %1137 = vmatpush1.bf16.msra.mxu0 %v1120
  %1138 = vmatprep.subr.bf16.mxu0 0
  %1139 = vmatpush1.bf16.msra.mxu0 %v1121
  %1140 = vmatprep.subr.bf16.mxu0 0
  %1141 = vmatpush1.bf16.msra.mxu0 %v1122
  %1142 = vmatprep.subr.bf16.mxu0 0
  %1143 = vmatpush1.bf16.msra.mxu0 %v1123
  %1144 = vmatprep.subr.bf16.mxu0 0
  %1145 = vmatpush1.bf16.msra.mxu0 %v1124
  %1146 = vmatprep.subr.bf16.mxu0 0
  %1147 = vmatpush1.bf16.msra.mxu0 %v1125
  %1148 = vmatprep.subr.bf16.mxu0 0
  %1149 = vmatpush1.bf16.msra.mxu0 %v1126
  %1150 = vmatprep.subr.bf16.mxu0 0
  %1151 = vmatpush1.bf16.msra.mxu0 %v1127
  %1152 = vmatprep.subr.bf16.mxu0 0
  %1153 = vmatpush1.bf16.msra.mxu0 0
  %1154 = vmatprep.subr.bf16.mxu0 0
  %1155 = vmatpush1.bf16.msra.mxu0 0
  %1156 = vmatprep.subr.bf16.mxu0 0
  %1157 = vmatpush1.bf16.msra.mxu0 0
  %1158 = vmatprep.subr.bf16.mxu0 0
  %1159 = vmatpush1.bf16.msra.mxu0 0
  %1160 = vmatprep.subr.bf16.mxu0 0
  %1161 = vmatpush1.bf16.msra.mxu0 0
  %1162 = vmatprep.subr.bf16.mxu0 0
  %1163 = vmatpush1.bf16.msra.mxu0 0
  %1164 = vmatprep.subr.bf16.mxu0 0
  %1165 = vmatpush1.bf16.msra.mxu0 0
  %1166 = vmatprep.subr.bf16.mxu0 0
  %1167 = vmatpush1.bf16.msra.mxu0 0
  %1168 = vmatprep.mubr.bf16.mxu0 0
  %1169 = vmatmul.mubr.bf16.gmra.mrb[0].mxu0 %v1062
  %v1170 = vpop.f32.mrb[0].mxu0
  %v1171 = vadd.f32 %v1086, %v1170
  %v1172 = vpop.f32.mrb[0].mxu0
  %v1173 = vpop.f32.mrb[0].mxu0
  %v1174 = vadd.f32 %v1086, %v1173
  %v1175 = vpop.f32.mrb[0].mxu0
  %1176 = vdwg.mxu0
  %v1177 = vadd.f32 %v1171, %v572
  %v1178 = vadd.f32 %v1174, %v575
  %1179 = vst [vmem:[%s5] sm:$0xff] %v1177
  %1180 = vst [vmem:[%s5 + $0x8] sm:$0xff] %v1178
  // Predicated region
  $region22: #{mlp_autoencoder_forward.1} parent=0 // pred_check
    _
  $region23: #{mlp_autoencoder_forward.1} parent=0 // pred_check_branch
    %1182 = sbr.rel (0) target = $region25
  $region24: #{mlp_autoencoder_forward.1} parent=0 // pred_region
    _
  $region25: #{mlp_autoencoder_forward.1} parent=0 // pred_fallthru
    _
  // Predicated region
  $region26: #{mlp_autoencoder_forward.1} parent=0 // pred_check
    _
  $region27: #{mlp_autoencoder_forward.1} parent=0 // pred_check_branch
    %1184 = sbr.rel (0) target = $region29
  $region28: #{mlp_autoencoder_forward.1} parent=0 // pred_region
    _
  $region29: #{mlp_autoencoder_forward.1} parent=0 // pred_fallthru
    _

</llo_original>
